<compile_context>
chip_gen: v5e
topology: v5e:2x2
jax: 0.10.0
libtpu: 0.0.40
codegen_flags: <defaults>
</compile_context>

<pallas_src>
import jax
import jax.numpy as jnp
from jax.experimental import pallas as pl
from jax.experimental.pallas import tpu as pltpu


# Aggregate VMEM budget for all (n inputs + 1 output) double-buffered tiles,
# plus the explicit scoped limit that covers it (with headroom for internal
# scratch). 48 MiB scoped fits v7x's 64 MiB/TC physical VMEM; v5e/v6e have 128 MiB.
_VMEM_TILE_BUDGET = 36 << 20
_VMEM_LIMIT_BYTES = 48 << 20
_LANE_CANDIDATES = (8192, 4096, 2048, 1024, 512, 256, 128)


def _round_up(x, m):
    return -(-x // m) * m


def _pick_lane_width(total):
    """Widest multiple-of-128 divisor of `total`, preferring >=8 sublane rows."""
    best = 0
    for cand in _LANE_CANDIDATES:
        if total % cand == 0:
            if total // cand >= 8:
                return cand
            if best == 0:
                best = cand
    return best


def _build_kernel(n, weighted, cast_to_f32):
    """Fused kernel: out = x0 + sum_i coeff[i] * x_i, accumulated in f32 vregs."""

    def _load(ref):
        v = ref[...]
        return v.astype(jnp.float32) if cast_to_f32 else v

    if weighted:
        def kernel(coeff_ref, *refs):
            x_refs, o_ref = refs[:-1], refs[-1]
            acc = _load(x_refs[0])           # x[0] always has coefficient 1.0
            for i in range(1, n):
                acc = acc + _load(x_refs[i]) * coeff_ref[i]
            o_ref[...] = acc.astype(o_ref.dtype)
    else:
        def kernel(*refs):
            x_refs, o_ref = refs[:-1], refs[-1]
            acc = _load(x_refs[0])
            for i in range(1, n):
                acc = acc + _load(x_refs[i])
            o_ref[...] = acc.astype(o_ref.dtype)

    return kernel


def _plan_tiling(M, N, itemsize, budget_per_buf, per_input_bytes):
    """Pick (block_shape, grid, index_map) for a 2D (M, N) view."""
    n_pad = _round_up(N, 128)                  # lanes pad to 128 in VMEM
    want_split = per_input_bytes >= (1 << 20)  # big enough to feed 2 TCs (v7x)

    if M > 1:
        # Row tiling: the last dim stays full-extent (always a legal block shape).
        row_bytes = n_pad * itemsize
        max_tm = max(1, budget_per_buf // row_bytes)
        if max_tm >= M:
            tm = M
            if want_split and M >= 64:
                # Force >=2 grid steps so both v7x TensorCores get a shard.
                tm = min(M, _round_up(-(-M // 2), 32))
        elif M <= 32:
            tm = M
        else:
            # Multiple of 32 satisfies sublane tiling for f32 / bf16 / int8.
            tm = min(M, max(32, (max_tm // 32) * 32))
        return (tm, N), (pl.cdiv(M, tm),), (lambda i: (i, 0))

    # Single-row view: tile along lanes (tile width multiple of 128; the ragged
    # final block's stores are masked by Pallas, so no padding copy is needed).
    sub = {1: 32, 2: 16}.get(itemsize, 8)
    col_bytes = sub * itemsize
    max_tn = max(128, ((budget_per_buf // col_bytes) // 128) * 128)
    if max_tn >= N:
        tn = N
        if want_split and N >= 256:
            tn = min(N, _round_up(-(-N // 2), 128))
    else:
        tn = max_tn
    return (M, tn), (pl.cdiv(N, tn),), (lambda i: (0, i))


def pallas_sum(xs, weight=False, w=None):
    """JAX/Pallas equivalent of Sum.forward.

    xs: list/tuple of n arrays, each (B, C, H, W), same shape & dtype.
    w:  (n-1,) raw parameter (only used if weight=True).
    """
    n = len(xs)
    if n == 1:
        return xs[0]

    shape = xs[0].shape
    dtype = xs[0].dtype
    total = int(xs[0].size)
    itemsize = jnp.dtype(dtype).itemsize       # actual itemsize (no f32 clamp)

    # Contiguous 2D view (pure reshape, no data movement, no padding copy).
    lane = _pick_lane_width(total)
    if lane:
        M, N = total // lane, lane
    elif len(shape) >= 2:
        # Awkward element count: keep the natural last dim as lanes; edge lanes
        # are masked at the store. Still one fused pass, zero extra HBM traffic.
        N = int(shape[-1])
        M = total // N
    else:
        M, N = 1, total
    flats = [x.reshape(M, N) for x in xs]

    per_input_bytes = total * itemsize
    budget_per_buf = _VMEM_TILE_BUDGET // (2 * (n + 1))   # double-buffered
    block, grid, index_map = _plan_tiling(M, N, itemsize, budget_per_buf,
                                          per_input_bytes)

    weighted = bool(weight)
    cast_to_f32 = jnp.issubdtype(dtype, jnp.floating) and dtype != jnp.float32
    kernel = _build_kernel(n, weighted, cast_to_f32)

    x_specs = [pl.BlockSpec(block, index_map) for _ in range(n)]
    # TODO(synk): optionally sweep pipeline_mode=pl.Buffered(3) on the input
    # specs; expected gain is small since the kernel sits at the HBM roofline.

    if weighted:
        # Per-tensor multipliers: 1.0 for x[0]; sigmoid(w)*2 for the rest.
        coeff = jnp.concatenate(
            [jnp.ones((1,), jnp.float32),
             jax.nn.sigmoid(w.astype(jnp.float32)) * 2.0])
        in_specs = [pl.BlockSpec(memory_space=pltpu.MemorySpace.SMEM)] + x_specs
        operands = (coeff, *flats)
    else:
        in_specs = x_specs
        operands = tuple(flats)

    out = pl.pallas_call(
        kernel,
        out_shape=jax.ShapeDtypeStruct((M, N), dtype),
        grid_spec=pltpu.PrefetchScalarGridSpec(
            num_scalar_prefetch=0,
            grid=grid,
            in_specs=in_specs,
            out_specs=pl.BlockSpec(block, index_map),
        ),
        compiler_params=pltpu.CompilerParams(
            # Single spatial axis, independent tiles -> shard across TCs on v7x.
            dimension_semantics=("parallel",),
            vmem_limit_bytes=_VMEM_LIMIT_BYTES,
        ),
    )(*operands)

    return out.reshape(shape)


if __name__ == "__main__":
    # Small shapes consistent with the module's usage: n feature maps of (B, C, H, W).
    n, B, C, H, W = 3, 2, 4, 16, 16

    key = jax.random.PRNGKey(0)
    keys = jax.random.split(key, n)
    xs = [jax.random.normal(k, (B, C, H, W), dtype=jnp.float32) for k in keys]

    # Deterministic parameter init matching nn.Module.__init__: -arange(1, n) / 2
    w_param = -jnp.arange(1.0, float(n), dtype=jnp.float32) / 2.0  # shape (n-1,)
    coeffs = jax.nn.sigmoid(w_param) * 2.0

    # --- weighted variant ---
    y_w = jax.block_until_ready(pallas_sum(xs, weight=True, w=w_param))
    y_w_ref = xs[0]
    for i in range(n - 1):
        y_w_ref = y_w_ref + xs[i + 1] * coeffs[i]
    assert y_w.shape == (B, C, H, W) and y_w.dtype == xs[0].dtype
    assert jnp.allclose(y_w, y_w_ref, atol=1e-5, rtol=1e-5)

    # --- unweighted variant (specialized kernel: no coeff multiplies) ---
    y_u = jax.block_until_ready(pallas_sum(xs, weight=False))
    y_u_ref = xs[0]
    for i in range(n - 1):
        y_u_ref = y_u_ref + xs[i + 1]
    assert jnp.allclose(y_u, y_u_ref, atol=1e-5, rtol=1e-5)

    # --- bf16 inputs (exercises f32 vreg accumulation + single cast at store,
    #     with VMEM budgeted at 2 B/elem) ---
    xs_bf = [x.astype(jnp.bfloat16) for x in xs]
    y_bf = jax.block_until_ready(pallas_sum(xs_bf, weight=True, w=w_param))
    y_bf_ref = xs_bf[0].astype(jnp.float32)
    for i in range(n - 1):
        y_bf_ref = y_bf_ref + xs_bf[i + 1].astype(jnp.float32) * coeffs[i]
    assert y_bf.dtype == jnp.bfloat16
    assert jnp.allclose(y_bf.astype(jnp.float32), y_bf_ref, atol=3e-2, rtol=3e-2)

    # --- odd spatial size (total not divisible by 128): no-pad masked-edge path ---
    xs_odd = [jax.random.normal(k, (2, 4, 5, 5), dtype=jnp.float32) for k in keys]
    y_o = jax.block_until_ready(pallas_sum(xs_odd, weight=True, w=w_param))
    y_o_ref = xs_odd[0]
    for i in range(n - 1):
        y_o_ref = y_o_ref + xs_odd[i + 1] * coeffs[i]
    assert y_o.shape == (2, 4, 5, 5)
    assert jnp.allclose(y_o, y_o_ref, atol=1e-5, rtol=1e-5)

    # --- larger tensor: exercises the wide-lane view, multi-step grid and the
    #     >=2-step split for v7x megacore sharding ---
    xs_big = [jax.random.normal(k, (4, 16, 128, 128), dtype=jnp.float32) for k in keys]
    y_b = jax.block_until_ready(pallas_sum(xs_big, weight=True, w=w_param))
    y_b_ref = xs_big[0]
    for i in range(n - 1):
        y_b_ref = y_b_ref + xs_big[i + 1] * coeffs[i]
    assert jnp.allclose(y_b, y_b_ref, atol=1e-5, rtol=1e-5)

    print("KERNEL_OK")
</pallas_src>

<mosaic_0001>
module attributes {stable_mosaic.version = 11 : i64} {
  func.func @kernel(%arg0: i32, %arg1: memref<3xf32, #tpu.memory_space<smem>>, %arg2: memref<8x256xf32, #tpu.memory_space<vmem>>, %arg3: memref<8x256xf32, #tpu.memory_space<vmem>>, %arg4: memref<8x256xf32, #tpu.memory_space<vmem>>, %arg5: memref<8x256xf32, #tpu.memory_space<vmem>>) attributes {dimension_semantics = [#tpu.dimension_semantics<parallel>], iteration_bounds = array<i64: 1>, scalar_prefetch = 0 : i64, scratch_operands = 0 : i64, tpu.core_type = #tpu.core_type<tc>, window_params = [{transform_indices = @transform_0, window_bounds = array<i64: 3>}, {transform_indices = @transform_1, window_bounds = array<i64: 8, 256>}, {transform_indices = @transform_2, window_bounds = array<i64: 8, 256>}, {transform_indices = @transform_3, window_bounds = array<i64: 8, 256>}, {transform_indices = @transform_4, window_bounds = array<i64: 8, 256>}]} {
    %c0 = arith.constant 0 : index
    %c0_0 = arith.constant 0 : index
    %0 = vector.load %arg2[%c0, %c0_0] : memref<8x256xf32, #tpu.memory_space<vmem>>, vector<8x256xf32>
    %c0_1 = arith.constant 0 : index
    %c0_2 = arith.constant 0 : index
    %1 = vector.load %arg3[%c0_1, %c0_2] : memref<8x256xf32, #tpu.memory_space<vmem>>, vector<8x256xf32>
    %c1 = arith.constant 1 : index
    %2 = memref.load %arg1[%c1] : memref<3xf32, #tpu.memory_space<smem>>
    %3 = vector.broadcast %2 : f32 to vector<8x256xf32>
    %4 = arith.mulf %1, %3 : vector<8x256xf32>
    %5 = arith.addf %0, %4 : vector<8x256xf32>
    %c0_3 = arith.constant 0 : index
    %c0_4 = arith.constant 0 : index
    %6 = vector.load %arg4[%c0_3, %c0_4] : memref<8x256xf32, #tpu.memory_space<vmem>>, vector<8x256xf32>
    %c2 = arith.constant 2 : index
    %7 = memref.load %arg1[%c2] : memref<3xf32, #tpu.memory_space<smem>>
    %8 = vector.broadcast %7 : f32 to vector<8x256xf32>
    %9 = arith.mulf %6, %8 : vector<8x256xf32>
    %10 = arith.addf %5, %9 : vector<8x256xf32>
    %c0_5 = arith.constant 0 : index
    %c0_6 = arith.constant 0 : index
    %11 = vector.load %arg5[%c0_5, %c0_6] : memref<8x256xf32, #tpu.memory_space<vmem>>, vector<8x256xf32>
    tpu.vector_store %arg5[%c0_5, %c0_6], %10 {strides = array<i32>} : memref<8x256xf32, #tpu.memory_space<vmem>>, vector<8x256xf32>,
    return
  }
  func.func @transform_0(%arg0: i32) -> i32 {
    %c0_i32 = arith.constant 0 : i32
    %c0_i32_0 = arith.constant 0 : i32
    return %c0_i32 : i32
  }
  func.func @transform_1(%arg0: i32) -> (i32, i32) {
    %c0_i32 = arith.constant 0 : i32
    %c0_i32_0 = arith.constant 0 : i32
    return %arg0, %c0_i32 : i32, i32
  }
  func.func @transform_2(%arg0: i32) -> (i32, i32) {
    %c0_i32 = arith.constant 0 : i32
    %c0_i32_0 = arith.constant 0 : i32
    return %arg0, %c0_i32 : i32, i32
  }
  func.func @transform_3(%arg0: i32) -> (i32, i32) {
    %c0_i32 = arith.constant 0 : i32
    %c0_i32_0 = arith.constant 0 : i32
    return %arg0, %c0_i32 : i32, i32
  }
  func.func @transform_4(%arg0: i32) -> (i32, i32) {
    %c0_i32 = arith.constant 0 : i32
    %c0_i32_0 = arith.constant 0 : i32
    return %arg0, %c0_i32 : i32, i32
  }
}

</mosaic_0001>

<llo_original>
// kernel: tpu_custom_call.1
$region0: #{tpu_custom_call.1}
  #allocation0 [shape = 'u32[]', space=smem, size = 0x4, offset = 0x4, fixed_abs, tag = 'smem constant byte address 0x4 - core index']
  #allocation1 [shape = 'u32[72,128]{1,0:T(1,128)}', space=vmem, size = 0x9000, scoped, tag = 'internal scratch']
  %s0 = inlined_call_operand.hbm [shape: f32[3], index: 0, kind: input, shape index: {}]
  %s1 = inlined_call_operand.hbm [shape: f32[8,256], index: 1, kind: input, shape index: {}]
  %s2 = inlined_call_operand.hbm [shape: f32[8,256], index: 2, kind: input, shape index: {}]
  %s3 = inlined_call_operand.hbm [shape: f32[8,256], index: 3, kind: input, shape index: {}]
  %s4 = inlined_call_operand.hbm [shape: f32[8,256], index: 4, kind: output, shape index: {}]
  %s5 = sld [smem:[#allocation0]]
  $region42: #{tpu_custom_call.1} parent=0
    _
  %s7 = ssub.s32 1, %s5
  %s8 = scalar_select 0, %s7, %s5
  $region1: #{tpu_custom_call.1} parent=0
    #allocation2 [shape = 'u8[512]{0}', space=smem, size = 0x200, scoped, tag = 'input window, operand 0, single buffered']
    #allocation3 [shape = 's32[1]{0}', space=sflag, size = 0x4, scoped, tag = 'scoped memory for tpu_custom_call.1']
    #allocation4 [shape = 's32[1]{0}', space=sflag, size = 0x4, scoped, tag = 'scoped memory for tpu_custom_call.1']
    #allocation5 [shape = 's32[1]{0}', space=sflag, size = 0x4, scoped, tag = 'scoped memory for tpu_custom_call.1']
    #allocation6 [shape = 'u8[8192]{0}', space=vmem, size = 0x2000, scoped, tag = 'input window, operand 1, single buffered']
    #allocation7 [shape = 'u8[8192]{0}', space=vmem, size = 0x2000, scoped, tag = 'input window, operand 2, single buffered']
    #allocation8 [shape = 's32[1]{0}', space=sflag, size = 0x4, scoped, tag = 'scoped memory for tpu_custom_call.1']
    #allocation9 [shape = 'u8[8192]{0}', space=vmem, size = 0x2000, scoped, tag = 'input window, operand 3, single buffered']
    #allocation10 [shape = 'u8[8192]{0}', space=vmem, size = 0x2000, scoped, tag = 'output window, operand 0, single buffered']
    %9 = vsyncpa [#allocation5], 0
    %10 = vsyncpa [#allocation3], 0
    %11 = vsyncpa [#allocation8], 0
    %12 = vsyncpa [#allocation4], 0
    // Predicated region
    $region2: #{tpu_custom_call.1} parent=1 // pred_check
      _
    $region3: #{tpu_custom_call.1} parent=1 // pred_check_branch
      %14 = sbr.rel (0) target = $region5
    $region4: #{tpu_custom_call.1} parent=1 // pred_region
      %16 = vsyncadd [#allocation5], 0
      %s18 = sshll.u32 %s0, 4
      %s19 = int_to_ptr.hbm [resolvable:$true] %s18
      %21 = dma.hbm_to_smem %s19, 16, [#allocation2], [#allocation5]
    $region5: #{tpu_custom_call.1} parent=1 // pred_fallthru
      _
    // Predicated region
    $region6: #{tpu_custom_call.1} parent=1 // pred_check
      _
    $region7: #{tpu_custom_call.1} parent=1 // pred_check_branch
      %23 = sbr.rel (0) target = $region9
    $region8: #{tpu_custom_call.1} parent=1 // pred_region
      %25 = vsyncadd [#allocation3], 0
      %s27 = sshll.u32 %s1, 4
      %s28 = int_to_ptr.hbm [resolvable:$true] %s27
      %s29 = sshll.u32 [#allocation6], 4
      %s30 = int_to_ptr.vmem [resolvable:$true] %s29
      %32 = dma.hbm_to_vmem [thread:$0]  %s28, 256, %s30, [#allocation3]
    $region9: #{tpu_custom_call.1} parent=1 // pred_fallthru
      _
    // Predicated region
    $region10: #{tpu_custom_call.1} parent=1 // pred_check
      _
    $region11: #{tpu_custom_call.1} parent=1 // pred_check_branch
      %34 = sbr.rel (0) target = $region13
    $region12: #{tpu_custom_call.1} parent=1 // pred_region
      %36 = vsyncadd [#allocation8], 0
      %s38 = sshll.u32 %s2, 4
      %s39 = int_to_ptr.hbm [resolvable:$true] %s38
      %s40 = sshll.u32 [#allocation7], 4
      %s41 = int_to_ptr.vmem [resolvable:$true] %s40
      %43 = dma.hbm_to_vmem [thread:$0]  %s39, 256, %s41, [#allocation8]
    $region13: #{tpu_custom_call.1} parent=1 // pred_fallthru
      _
    // Predicated region
    $region14: #{tpu_custom_call.1} parent=1 // pred_check
      _
    $region15: #{tpu_custom_call.1} parent=1 // pred_check_branch
      %45 = sbr.rel (0) target = $region17
    $region16: #{tpu_custom_call.1} parent=1 // pred_region
      %47 = vsyncadd [#allocation8], 0
      %s49 = sshll.u32 %s3, 4
      %s50 = int_to_ptr.hbm [resolvable:$true] %s49
      %s51 = sshll.u32 [#allocation9], 4
      %s52 = int_to_ptr.vmem [resolvable:$true] %s51
      %54 = dma.hbm_to_vmem [thread:$0]  %s50, 256, %s52, [#allocation8]
    $region17: #{tpu_custom_call.1} parent=1 // pred_fallthru
      _
    // Predicated region
    $region18: #{tpu_custom_call.1} parent=1 // pred_check
      _
    $region19: #{tpu_custom_call.1} parent=1 // pred_check_branch
      %56 = sbr.rel (0) target = $region21
    $region20: #{tpu_custom_call.1} parent=1 // pred_region
      %58 = dma.done [#allocation5], 16
    $region21: #{tpu_custom_call.1} parent=1 // pred_fallthru
      _
    // Predicated region
    $region22: #{tpu_custom_call.1} parent=1 // pred_check
      _
    $region23: #{tpu_custom_call.1} parent=1 // pred_check_branch
      %60 = sbr.rel (0) target = $region25
    $region24: #{tpu_custom_call.1} parent=1 // pred_region
      %62 = dma.done [#allocation3], 256
    $region25: #{tpu_custom_call.1} parent=1 // pred_fallthru
      _
    // Predicated region
    $region26: #{tpu_custom_call.1} parent=1 // pred_check
      _
    $region27: #{tpu_custom_call.1} parent=1 // pred_check_branch
      %64 = sbr.rel (0) target = $region29
    $region28: #{tpu_custom_call.1} parent=1 // pred_region
      %66 = dma.done [#allocation8], 256
    $region29: #{tpu_custom_call.1} parent=1 // pred_fallthru
      _
    // Predicated region
    $region30: #{tpu_custom_call.1} parent=1 // pred_check
      _
    $region31: #{tpu_custom_call.1} parent=1 // pred_check_branch
      %68 = sbr.rel (0) target = $region33
    $region32: #{tpu_custom_call.1} parent=1 // pred_region
      %70 = dma.done [#allocation8], 256
    $region33: #{tpu_custom_call.1} parent=1 // pred_fallthru
      _
    %71 = sfence
    %v72 = vld [vmem:[#allocation6] sm:$0xff]
    %v73 = vld [vmem:[#allocation6 + $0x8] sm:$0xff]
    %v74 = vld [vmem:[#allocation7] sm:$0xff]
    %v75 = vld [vmem:[#allocation7 + $0x8] sm:$0xff]
    %s76 = sld [smem:[#allocation2 + $0x1]]
    %v77 = vstv %s76
    %v78 = vmul.f32 %v74, %v77
    %v79 = vmul.f32 %v75, %v77
    %v80 = vadd.f32 %v72, %v78
    %v81 = vadd.f32 %v73, %v79
    %v82 = vld [vmem:[#allocation9] sm:$0xff]
    %v83 = vld [vmem:[#allocation9 + $0x8] sm:$0xff]
    %s84 = sld [smem:[#allocation2 + $0x2]]
    %v85 = vstv %s84
    %v86 = vmul.f32 %v82, %v85
    %v87 = vmul.f32 %v83, %v85
    %v88 = vadd.f32 %v80, %v86
    %v89 = vadd.f32 %v81, %v87
    %90 = vst [vmem:[#allocation10] sm:$0xff] %v88
    %91 = vst [vmem:[#allocation10 + $0x8] sm:$0xff] %v89
    // Predicated region
    $region34: #{tpu_custom_call.1} parent=1 // pred_check
      _
    $region35: #{tpu_custom_call.1} parent=1 // pred_check_branch
      %93 = sbr.rel (0) target = $region37
    $region36: #{tpu_custom_call.1} parent=1 // pred_region
      %95 = vsyncadd [#allocation4], 0
      %s97 = sshll.u32 [#allocation10], 4
      %s98 = int_to_ptr.vmem [resolvable:$true] %s97
      %s99 = sshll.u32 %s4, 4
      %s100 = int_to_ptr.hbm [resolvable:$true] %s99
      %102 = dma.vmem_to_hbm [thread:$0]  %s98, 256, %s100, [#allocation4]
    $region37: #{tpu_custom_call.1} parent=1 // pred_fallthru
      _
    // Predicated region
    $region38: #{tpu_custom_call.1} parent=1 // pred_check
      _
    $region39: #{tpu_custom_call.1} parent=1 // pred_check_branch
      %104 = sbr.rel (0) target = $region41
    $region40: #{tpu_custom_call.1} parent=1 // pred_region
      %106 = dma.done [#allocation4], 256
    $region41: #{tpu_custom_call.1} parent=1 // pred_fallthru
      _
    %107 = vsyncpa [#allocation3], 1
    %108 = vsyncpa [#allocation8], 1
    %109 = vsyncpa [#allocation4], 1
    %110 = vsyncpa [#allocation5], 1

</llo_original>
